<compile_context>
chip_gen: v7x
topology: tpu7x:2x2x1
jax: 0.10.0
libtpu: 0.0.40
codegen_flags: <defaults>
</compile_context>

<pallas_src>
import functools
import math

import jax
import jax.numpy as jnp
import numpy as np
from jax.experimental import pallas as pl
from jax.experimental.pallas import tpu as pltpu


# ---------------------------------------------------------------------------
# helpers
# ---------------------------------------------------------------------------

def _lane_fold_factor(hw, c):
    """Smallest k with (k*c) % 128 == 0 and hw % k == 0, else 1."""
    if c % 128 == 0:
        return 1
    k = 128 // math.gcd(c, 128)
    return k if hw % k == 0 else 1


def _pick_row_tile(hw, target):
    """Largest tile <= target that divides hw and is a multiple of 8."""
    if hw <= target:
        return hw
    for t in range(min(target, hw), 0, -1):
        if hw % t == 0 and t % 8 == 0:
            return t
    return hw


def _vmem_capacity_bytes():
    try:
        return int(pltpu.get_tpu_info().vmem_capacity_bytes)
    except Exception:
        return 64 * 1024 * 1024  # conservative (v7x per-TensorCore VMEM)


def _fold_channel_sums(sq, c_fold):
    """sq: (1, 1, Cf) per-(slot, channel) sums, Cf = c_fold * C, channel fastest.

    Returns (1, 1, Cf) where lane j holds the TOTAL over all c_fold slots of
    channel (j % C), i.e. the per-channel sum replicated c_fold times.  Keeps
    everything lane-dense: no reshape/slice, just c_fold-1 cheap XLU rolls.
    Because each true channel appears exactly c_fold times, a mean over the Cf
    lanes equals the mean over the true C channels.
    """
    if c_fold == 1:
        return sq
    c_true = sq.shape[-1] // c_fold
    tot = sq
    for i in range(1, c_fold):
        tot = tot + pltpu.roll(sq, shift=i * c_true, axis=2)
    return tot


# ---------------------------------------------------------------------------
# kernels
# ---------------------------------------------------------------------------

def _grn_slab_kernel(x_ref, gamma_ref, beta_ref, o_ref, *, c_fold):
    """Single-pass kernel: whole (HWf, Cf) slab of one batch element in VMEM."""
    x = x_ref[...]                                        # (1, HWf, Cf), in-dtype
    xf = x.astype(jnp.float32)
    sq = jnp.sum(xf * xf, axis=1, keepdims=True)          # (1, 1, Cf) f32
    tot = _fold_channel_sums(sq, c_fold)                  # per-channel, replicated
    gx = jnp.sqrt(tot)
    nx = gx / (jnp.mean(gx, axis=-1, keepdims=True) + 1e-6)
    scale = gamma_ref[...] * nx + 1.0                     # (1, 1, Cf) f32
    # Elementwise in the input dtype (bf16-friendly on v6e/v7x, f32 here).
    o_ref[...] = x * scale.astype(x.dtype) + beta_ref[...].astype(x.dtype)


def _grn_reduce_kernel(x_ref, gamma_ref, scale_ref, *, c_fold):
    """Pass 1 (tiled): accumulate sum(x^2) over HW tiles, finalize the scale."""
    t = pl.program_id(1)

    @pl.when(t == 0)
    def _():
        scale_ref[...] = jnp.zeros_like(scale_ref)

    xf = x_ref[...].astype(jnp.float32)                   # (1, T, Cf)
    scale_ref[...] += jnp.sum(xf * xf, axis=1, keepdims=True)

    @pl.when(t == pl.num_programs(1) - 1)
    def _():
        tot = _fold_channel_sums(scale_ref[...], c_fold)
        gx = jnp.sqrt(tot)
        nx = gx / (jnp.mean(gx, axis=-1, keepdims=True) + 1e-6)
        scale_ref[...] = gamma_ref[...] * nx + 1.0        # (1, 1, Cf) f32


def _grn_apply_kernel(x_ref, scale_ref, beta_ref, o_ref):
    """Pass 2 (tiled): out = x * scale + beta."""
    x = x_ref[...]                                        # (1, T, Cf)
    o_ref[...] = x * scale_ref[...].astype(x.dtype) + beta_ref[...].astype(x.dtype)


# ---------------------------------------------------------------------------
# wrapper
# ---------------------------------------------------------------------------

def grn_pallas(x, gamma, beta, *, row_tile_target=512, force_path=None):
    """GRN forward. x: (N, H, W, C) NHWC; gamma, beta: (C,). Returns (N,H,W,C)."""
    N, H, W, C = x.shape
    HW = H * W
    itemsize = jnp.dtype(x.dtype).itemsize

    # Lane folding: contiguous (free) reshape to a 128-multiple lane dim.
    k = _lane_fold_factor(HW, C)
    Cf, HWf = C * k, HW // k
    x_f = x.reshape(N, HWf, Cf)
    gamma_f = jnp.tile(gamma.reshape(-1).astype(jnp.float32), k).reshape(1, 1, Cf)
    beta_f = jnp.tile(beta.reshape(-1).astype(jnp.float32), k).reshape(1, 1, Cf)

    vmem_cap = _vmem_capacity_bytes()
    # slab footprint: double-buffered in + out blocks + f32 temporaries
    slab_bytes = HWf * Cf * (4 * itemsize + 8)
    use_slab = (force_path == "slab") or (
        force_path is None and slab_bytes <= int(0.7 * vmem_cap))

    if use_slab:
        vmem_limit = int(min(0.9 * vmem_cap,
                             max(2 * slab_bytes, 32 * 1024 * 1024)))
        out_f = pl.pallas_call(
            functools.partial(_grn_slab_kernel, c_fold=k),
            out_shape=jax.ShapeDtypeStruct((N, HWf, Cf), x.dtype),
            grid_spec=pltpu.PrefetchScalarGridSpec(
                num_scalar_prefetch=0,
                grid=(N,),
                in_specs=[
                    pl.BlockSpec((1, HWf, Cf), lambda n: (n, 0, 0)),
                    pl.BlockSpec((1, 1, Cf), lambda n: (0, 0, 0)),
                    pl.BlockSpec((1, 1, Cf), lambda n: (0, 0, 0)),
                ],
                out_specs=pl.BlockSpec((1, HWf, Cf), lambda n: (n, 0, 0)),
            ),
            compiler_params=pltpu.CompilerParams(
                dimension_semantics=("parallel",),
                vmem_limit_bytes=vmem_limit,
            ),
            cost_estimate=pl.CostEstimate(
                flops=5 * N * HW * C,
                transcendentals=2 * N * C,
                bytes_accessed=2 * N * HW * C * itemsize,
            ),
        )(x_f, gamma_f, beta_f)
        return out_f.reshape(N, H, W, C)

    # ---- tiled two-pass path (large HW*C) ----
    T = _pick_row_tile(HWf, row_tile_target)
    n_tiles = HWf // T
    tile_bytes = T * Cf * itemsize
    vmem_limit = int(min(0.9 * vmem_cap,
                         max(8 * tile_bytes, 32 * 1024 * 1024)))

    scale = pl.pallas_call(
        functools.partial(_grn_reduce_kernel, c_fold=k),
        out_shape=jax.ShapeDtypeStruct((N, 1, Cf), jnp.float32),
        grid_spec=pltpu.PrefetchScalarGridSpec(
            num_scalar_prefetch=0,
            grid=(N, n_tiles),
            in_specs=[
                pl.BlockSpec((1, T, Cf), lambda n, t: (n, t, 0)),
                pl.BlockSpec((1, 1, Cf), lambda n, t: (0, 0, 0)),
            ],
            out_specs=pl.BlockSpec((1, 1, Cf), lambda n, t: (n, 0, 0)),
        ),
        compiler_params=pltpu.CompilerParams(
            dimension_semantics=("parallel", "arbitrary"),
            vmem_limit_bytes=vmem_limit,
        ),
        cost_estimate=pl.CostEstimate(
            flops=2 * N * HW * C,
            transcendentals=2 * N * C,
            bytes_accessed=N * HW * C * itemsize + N * Cf * 4,
        ),
    )(x_f, gamma_f)

    out_f = pl.pallas_call(
        _grn_apply_kernel,
        out_shape=jax.ShapeDtypeStruct((N, HWf, Cf), x.dtype),
        grid_spec=pltpu.PrefetchScalarGridSpec(
            num_scalar_prefetch=0,
            grid=(N, n_tiles),
            in_specs=[
                pl.BlockSpec((1, T, Cf), lambda n, t: (n, t, 0)),
                pl.BlockSpec((1, 1, Cf), lambda n, t: (n, 0, 0)),
                pl.BlockSpec((1, 1, Cf), lambda n, t: (0, 0, 0)),
            ],
            out_specs=pl.BlockSpec((1, T, Cf), lambda n, t: (n, t, 0)),
        ),
        compiler_params=pltpu.CompilerParams(
            dimension_semantics=("parallel", "parallel"),
            vmem_limit_bytes=vmem_limit,
        ),
        cost_estimate=pl.CostEstimate(
            flops=2 * N * HW * C,
            transcendentals=0,
            bytes_accessed=2 * N * HW * C * itemsize,
        ),
    )(x_f, scale, beta_f)
    return out_f.reshape(N, H, W, C)


# ---------------------------------------------------------------------------
# pure-JAX reference (mirrors the PyTorch forward exactly)
# ---------------------------------------------------------------------------

def grn_reference(x, gamma, beta):
    xf = x.astype(jnp.float32)
    gx = jnp.sqrt(jnp.sum(xf * xf, axis=(1, 2), keepdims=True))      # (N,1,1,C)
    nx = gx / (jnp.mean(gx, axis=-1, keepdims=True) + 1e-6)          # (N,1,1,C)
    g = gamma.reshape(1, 1, 1, -1).astype(jnp.float32)
    b = beta.reshape(1, 1, 1, -1).astype(jnp.float32)
    return (g * (xf * nx) + b + xf).astype(x.dtype)


if __name__ == "__main__":
    N, H, W, C = 2, 8, 8, 32

    key = jax.random.PRNGKey(0)
    kx, kg, kb = jax.random.split(key, 3)
    x = jax.random.normal(kx, (N, H, W, C), dtype=jnp.float32)
    # nn.Parameter shapes are (1,1,1,dim); init non-zero so the normalization
    # path is actually exercised (torch init is zeros).
    gamma = 0.1 * jax.random.normal(kg, (C,), dtype=jnp.float32)
    beta = 0.05 * jax.random.normal(kb, (C,), dtype=jnp.float32)

    ref = grn_reference(x, gamma, beta)

    # Slab path (fits in VMEM at this size).
    out_slab = jax.block_until_ready(grn_pallas(x, gamma, beta))
    np.testing.assert_allclose(np.asarray(out_slab), np.asarray(ref),
                               rtol=1e-5, atol=1e-5)

    # Tiled two-pass path (what large ConvNeXt-V2 shapes would take) — force it
    # at small shape to verify the accumulator / apply kernels as well.
    out_tiled = jax.block_until_ready(
        grn_pallas(x, gamma, beta, row_tile_target=8, force_path="tiled"))
    np.testing.assert_allclose(np.asarray(out_tiled), np.asarray(ref),
                               rtol=1e-5, atol=1e-5)

    print("KERNEL_OK")
</pallas_src>

<mosaic_0001>
module attributes {stable_mosaic.version = 11 : i64} {
  func.func @_grn_slab_kernel(%arg0: i32, %arg1: memref<1x16x128xf32, #tpu.memory_space<vmem>>, %arg2: memref<1x1x128xf32, #tpu.memory_space<vmem>>, %arg3: memref<1x1x128xf32, #tpu.memory_space<vmem>>, %arg4: memref<1x16x128xf32, #tpu.memory_space<vmem>>) attributes {dimension_semantics = [#tpu.dimension_semantics<parallel>], iteration_bounds = array<i64: 2>, scalar_prefetch = 0 : i64, scratch_operands = 0 : i64, tpu.core_type = #tpu.core_type<tc>, window_params = [{transform_indices = @transform_0, window_bounds = array<i64: 1, 16, 128>}, {pipeline_mode = #tpu.pipeline_mode<synchronous>, transform_indices = @transform_1, window_bounds = array<i64: 1, 1, 128>}, {pipeline_mode = #tpu.pipeline_mode<synchronous>, transform_indices = @transform_2, window_bounds = array<i64: 1, 1, 128>}, {transform_indices = @transform_3, window_bounds = array<i64: 1, 16, 128>}]} {
    %c0 = arith.constant 0 : index
    %c0_0 = arith.constant 0 : index
    %c0_1 = arith.constant 0 : index
    %0 = vector.load %arg1[%c0, %c0_0, %c0_1] : memref<1x16x128xf32, #tpu.memory_space<vmem>>, vector<1x16x128xf32>
    %1 = arith.mulf %0, %0 : vector<1x16x128xf32>
    %cst = arith.constant dense<0.000000e+00> : vector<1x128xf32>
    %2 = vector.multi_reduction <add>, %1, %cst [1] : vector<1x16x128xf32> to vector<1x128xf32>
    %3 = vector.shape_cast %2 : vector<1x128xf32> to vector<1x1x128xf32>
    %c32_i32 = arith.constant 32 : i32
    %4 = tpu.dynamic_rotate %3 by %c32_i32 dim 2 : vector<1x1x128xf32>, i32 -> vector<1x1x128xf32>
    %5 = arith.addf %3, %4 : vector<1x1x128xf32>
    %c64_i32 = arith.constant 64 : i32
    %6 = tpu.dynamic_rotate %3 by %c64_i32 dim 2 : vector<1x1x128xf32>, i32 -> vector<1x1x128xf32>
    %7 = arith.addf %5, %6 : vector<1x1x128xf32>
    %c96_i32 = arith.constant 96 : i32
    %8 = tpu.dynamic_rotate %3 by %c96_i32 dim 2 : vector<1x1x128xf32>, i32 -> vector<1x1x128xf32>
    %9 = arith.addf %7, %8 : vector<1x1x128xf32>
    %10 = math.sqrt %9 : vector<1x1x128xf32>
    %cst_2 = arith.constant dense<0.000000e+00> : vector<1x1xf32>
    %11 = vector.multi_reduction <add>, %10, %cst_2 [2] : vector<1x1x128xf32> to vector<1x1xf32>
    %12 = vector.shape_cast %11 : vector<1x1xf32> to vector<1x1x1xf32>
    %cst_3 = arith.constant 1.280000e+02 : f32
    %13 = vector.broadcast %cst_3 : f32 to vector<1x1x1xf32>
    %14 = arith.divf %12, %13 : vector<1x1x1xf32>
    %cst_4 = arith.constant 9.99999997E-7 : f32
    %15 = vector.broadcast %cst_4 : f32 to vector<1x1x1xf32>
    %16 = arith.addf %14, %15 : vector<1x1x1xf32>
    %17 = vector.broadcast %16 : vector<1x1x1xf32> to vector<1x1x128xf32>
    %18 = arith.divf %10, %17 : vector<1x1x128xf32>
    %c0_5 = arith.constant 0 : index
    %c0_6 = arith.constant 0 : index
    %c0_7 = arith.constant 0 : index
    %19 = vector.load %arg2[%c0_5, %c0_6, %c0_7] : memref<1x1x128xf32, #tpu.memory_space<vmem>>, vector<1x1x128xf32>
    %20 = arith.mulf %19, %18 : vector<1x1x128xf32>
    %cst_8 = arith.constant 1.000000e+00 : f32
    %21 = vector.broadcast %cst_8 : f32 to vector<1x1x128xf32>
    %22 = arith.addf %20, %21 : vector<1x1x128xf32>
    %23 = vector.broadcast %22 : vector<1x1x128xf32> to vector<1x16x128xf32>
    %24 = arith.mulf %0, %23 : vector<1x16x128xf32>
    %c0_9 = arith.constant 0 : index
    %c0_10 = arith.constant 0 : index
    %c0_11 = arith.constant 0 : index
    %25 = vector.load %arg3[%c0_9, %c0_10, %c0_11] : memref<1x1x128xf32, #tpu.memory_space<vmem>>, vector<1x1x128xf32>
    %26 = vector.broadcast %25 : vector<1x1x128xf32> to vector<1x16x128xf32>
    %27 = arith.addf %24, %26 : vector<1x16x128xf32>
    %c0_12 = arith.constant 0 : index
    %c0_13 = arith.constant 0 : index
    %c0_14 = arith.constant 0 : index
    %28 = vector.load %arg4[%c0_12, %c0_13, %c0_14] : memref<1x16x128xf32, #tpu.memory_space<vmem>>, vector<1x16x128xf32>
    tpu.vector_store %arg4[%c0_12, %c0_13, %c0_14], %27 {strides = array<i32>} : memref<1x16x128xf32, #tpu.memory_space<vmem>>, vector<1x16x128xf32>,
    return
  }
  func.func @transform_0(%arg0: i32) -> (i32, i32, i32) {
    %c0_i32 = arith.constant 0 : i32
    %c0_i32_0 = arith.constant 0 : i32
    %c0_i32_1 = arith.constant 0 : i32
    return %arg0, %c0_i32, %c0_i32_0 : i32, i32, i32
  }
  func.func @transform_1(%arg0: i32) -> (i32, i32, i32) {
    %c0_i32 = arith.constant 0 : i32
    %c0_i32_0 = arith.constant 0 : i32
    %c0_i32_1 = arith.constant 0 : i32
    %c0_i32_2 = arith.constant 0 : i32
    return %c0_i32, %c0_i32_0, %c0_i32_1 : i32, i32, i32
  }
  func.func @transform_2(%arg0: i32) -> (i32, i32, i32) {
    %c0_i32 = arith.constant 0 : i32
    %c0_i32_0 = arith.constant 0 : i32
    %c0_i32_1 = arith.constant 0 : i32
    %c0_i32_2 = arith.constant 0 : i32
    return %c0_i32, %c0_i32_0, %c0_i32_1 : i32, i32, i32
  }
  func.func @transform_3(%arg0: i32) -> (i32, i32, i32) {
    %c0_i32 = arith.constant 0 : i32
    %c0_i32_0 = arith.constant 0 : i32
    %c0_i32_1 = arith.constant 0 : i32
    return %arg0, %c0_i32, %c0_i32_0 : i32, i32, i32
  }
}

</mosaic_0001>

<llo_original>
// kernel: tpu_custom_call.1
$region0: #{tpu_custom_call.1}
  #allocation0 [shape = 'u32[]', space=smem, size = 0x4, offset = 0x4, fixed_abs, tag = 'smem constant byte address 0x4 - core index']
  #allocation1 [shape = 'u32[144,128]{1,0:T(1,128)}', space=vmem, size = 0x12000, scoped, tag = 'internal scratch']
  %s0 = inlined_call_operand.hbm [shape: f32[2,16,128], index: 0, kind: input, shape index: {}]
  %s1 = inlined_call_operand.vmem [shape: f32[1,1,128], index: 1, kind: input, shape index: {}]
  %s2 = inlined_call_operand.vmem [shape: f32[1,1,128], index: 2, kind: input, shape index: {}]
  %s3 = inlined_call_operand.hbm [shape: f32[2,16,128], index: 3, kind: output, shape index: {}]
  %s4 = sld [smem:[#allocation0]]
  $region49: #{tpu_custom_call.1} parent=0
    _
  %s6 = ssub.s32 1, %s4
  %s7 = scalar_select 0, %s6, %s4
  $region1: #{tpu_custom_call.1} parent=0
    #allocation2 [shape = 'u8[16384]{0}', space=vmem, size = 0x4000, scoped, tag = 'input window, operand 0']
    #allocation3 [shape = 's32[2]{0}', space=sflag, size = 0x8, scoped, tag = 'scoped memory for tpu_custom_call.1']
    #allocation4 [shape = 's32[2]{0}', space=sflag, size = 0x8, scoped, tag = 'scoped memory for tpu_custom_call.1']
    #allocation5 [shape = 'u8[16384]{0}', space=vmem, size = 0x4000, scoped, tag = 'output window, operand 0']
    %8 = vsyncpa [#allocation3], 0
    %s9 = scalar_lea.sflag [#allocation3], 1
    %10 = vsyncpa %s9, 0
    %11 = vsyncpa [#allocation4], 0
    %s12 = scalar_lea.sflag [#allocation4], 1
    %13 = vsyncpa %s12, 0
    loop: start=0, step=1, limit=4
    $region2: #{tpu_custom_call.1} parent=1 // loop_pre_header
      _
    $region3: #{tpu_custom_call.1} parent=1 // loop_header
      %s15 = sphi 0, %s19
      %p16 = scmp.ge.s32.totalorder %s15, 4
      %s25 = sphi 0, %s27
      %s28 = sphi 0, %s25
      %s29 = sphi 0, %s28
      %s45 = sphi 0, %s29
      %s49 = sphi 0, %s49
      %s51 = sphi 0, %s49
      %s52 = sphi 0, %s51
      %s66 = sphi 0, %s52
      %s70 = sphi 0, %s70
      %s72 = sphi 0, %s70
      %s73 = sphi 0, %s72
      %s87 = sphi 0, %s73
      %s93 = sphi 0, %s95
      %s96 = sphi 0, %s93
      %s97 = sphi 0, %s96
      %s113 = sphi 0, %s97
    $region4: #{tpu_custom_call.1} parent=1 // loop_header_branch
      %18 = sbr.rel (%p16) target = $region8
    $region5: #{tpu_custom_call.1} parent=1 // loop_body
      %s20 = ssub.s32 %s15, 1
      %s21 = ssub.s32 %s15, 2
      %s22 = sadd.s32 %s15, 1
      %s23 = ssub.s32 %s15, %s22
      %p24 = scmp.eq.s32.totalorder %s23, 0
      %s26 = sadd.s32 %s25, 1
      %s27 = scalar_select %p24, %s25, %s26
      %p30 = pneg %p24
      %p31 = scmp.eq.s32.totalorder %s15, 1
      %p32 = por %p30, %p31
      %p33 = scmp.ne.s32.totalorder %s25, %s28
      %p34 = scmp.eq.s32.totalorder %s15, 0
      %p35 = por %p33, %p34
      %p36 = scmp.ne.s32.totalorder %s25, %s28
      %p37 = scmp.eq.s32.totalorder %s20, 1
      %p38 = por %p36, %p37
      %p39 = scmp.ne.s32.totalorder %s28, %s29
      %p40 = scmp.eq.s32.totalorder %s20, 0
      %p41 = por %p39, %p40
      %p42 = scmp.ne.s32.totalorder %s28, %s29
      %p43 = scmp.eq.s32.totalorder %s21, 1
      %p44 = por %p42, %p43
      %p46 = scmp.ne.s32.totalorder %s29, %s45
      %p47 = scmp.eq.s32.totalorder %s21, 0
      %p48 = por %p46, %p47
      %s50 = sadd.s32 %s49, 1
      %p53 = scmp.eq.s32.totalorder %s15, 1
      %p54 = scmp.ne.s32.totalorder %s49, %s51
      %p55 = scmp.eq.s32.totalorder %s15, 0
      %p56 = por %p54, %p55
      %p57 = scmp.ne.s32.totalorder %s49, %s51
      %p58 = scmp.eq.s32.totalorder %s20, 1
      %p59 = por %p57, %p58
      %p60 = scmp.ne.s32.totalorder %s51, %s52
      %p61 = scmp.eq.s32.totalorder %s20, 0
      %p62 = por %p60, %p61
      %p63 = scmp.ne.s32.totalorder %s51, %s52
      %p64 = scmp.eq.s32.totalorder %s21, 1
      %p65 = por %p63, %p64
      %p67 = scmp.ne.s32.totalorder %s52, %s66
      %p68 = scmp.eq.s32.totalorder %s21, 0
      %p69 = por %p67, %p68
      %s71 = sadd.s32 %s70, 1
      %p74 = scmp.eq.s32.totalorder %s15, 1
      %p75 = scmp.ne.s32.totalorder %s70, %s72
      %p76 = scmp.eq.s32.totalorder %s15, 0
      %p77 = por %p75, %p76
      %p78 = scmp.ne.s32.totalorder %s70, %s72
      %p79 = scmp.eq.s32.totalorder %s20, 1
      %p80 = por %p78, %p79
      %p81 = scmp.ne.s32.totalorder %s72, %s73
      %p82 = scmp.eq.s32.totalorder %s20, 0
      %p83 = por %p81, %p82
      %p84 = scmp.ne.s32.totalorder %s72, %s73
      %p85 = scmp.eq.s32.totalorder %s21, 1
      %p86 = por %p84, %p85
      %p88 = scmp.ne.s32.totalorder %s73, %s87
      %p89 = scmp.eq.s32.totalorder %s21, 0
      %p90 = por %p88, %p89
      %s91 = ssub.s32 %s15, %s22
      %p92 = scmp.eq.s32.totalorder %s91, 0
      %s94 = sadd.s32 %s93, 1
      %s95 = scalar_select %p92, %s93, %s94
      %p98 = pneg %p92
      %p99 = scmp.eq.s32.totalorder %s15, 1
      %p100 = por %p98, %p99
      %p101 = scmp.ne.s32.totalorder %s93, %s96
      %p102 = scmp.eq.s32.totalorder %s15, 0
      %p103 = por %p101, %p102
      %p104 = scmp.ne.s32.totalorder %s93, %s96
      %p105 = scmp.eq.s32.totalorder %s20, 1
      %p106 = por %p104, %p105
      %p107 = scmp.ne.s32.totalorder %s96, %s97
      %p108 = scmp.eq.s32.totalorder %s20, 0
      %p109 = por %p107, %p108
      %p110 = scmp.ne.s32.totalorder %s96, %s97
      %p111 = scmp.eq.s32.totalorder %s21, 1
      %p112 = por %p110, %p111
      %p114 = scmp.ne.s32.totalorder %s97, %s113
      %p115 = scmp.eq.s32.totalorder %s21, 0
      %p116 = por %p114, %p115
      %p117 = scmp.le.s32.totalorder 1, %s15
      %p118 = scmp.lt.s32.totalorder %s15, 3
      %p119 = pnand %p117, %p118
      %p120 = pneg %p119
      // Predicated region
      $region9: #{tpu_custom_call.1} parent=5 // pred_check
        _
      $region10: #{tpu_custom_call.1} parent=5 // pred_check_branch
        %122 = sbr.rel (%p119) target = $region12
      $region11: #{tpu_custom_call.1} parent=5 // pred_region
        %s123 = ssub.s32 %s15, 1
        // Predicated region
        $region13: #{tpu_custom_call.1} parent=11 // pred_check
          %p124 = pneg %p62
        $region14: #{tpu_custom_call.1} parent=11 // pred_check_branch
          %126 = sbr.rel (%p124) target = $region16
        $region15: #{tpu_custom_call.1} parent=11 // pred_region
          _
        $region16: #{tpu_custom_call.1} parent=11 // pred_fallthru
          _
        // Predicated region
        $region17: #{tpu_custom_call.1} parent=11 // pred_check
          %p127 = pneg %p83
        $region18: #{tpu_custom_call.1} parent=11 // pred_check_branch
          %129 = sbr.rel (%p127) target = $region20
        $region19: #{tpu_custom_call.1} parent=11 // pred_region
          _
        $region20: #{tpu_custom_call.1} parent=11 // pred_fallthru
          _
      $region12: #{tpu_custom_call.1} parent=5 // pred_fallthru
        _
      %p130 = scmp.lt.s32.totalorder %s15, 2
      // Predicated region
      $region21: #{tpu_custom_call.1} parent=5 // pred_check
        %p131 = pneg %p130
      $region22: #{tpu_custom_call.1} parent=5 // pred_check_branch
        %133 = sbr.rel (%p131) target = $region24
      $region23: #{tpu_custom_call.1} parent=5 // pred_region
        // Predicated region
        $region25: #{tpu_custom_call.1} parent=23 // pred_check
          %p134 = pneg %p35
        $region26: #{tpu_custom_call.1} parent=23 // pred_check_branch
          %136 = sbr.rel (%p134) target = $region28
        $region27: #{tpu_custom_call.1} parent=23 // pred_region
          %s137 = sand.u32 %s25, 1
          %s138 = scalar_lea.sflag [#allocation3], %s137
          %s139 = sand.u32 %s25, 1
          %s140 = smul.addr %s139, 16
          %s141 = scalar_lea.vmem [#allocation2], %s140
          %s143 = ssub.s32 256, 256
          %144 = vsyncadd %s138, %s143
          %s145 = smul.addr %s15, 2
          %s146 = smul.addr %s145, 128
          %s147 = scalar_lea.hbm %s0, %s146
          %s148 = sshll.u32 %s141, 4
          %s149 = int_to_ptr.vmem [resolvable:$true] %s148
          %154 = dma.hbm_to_vmem [thread:$0]  %s147, 256, %s149, %s138, 128, 128, 8
        $region28: #{tpu_custom_call.1} parent=23 // pred_fallthru
          _
      $region24: #{tpu_custom_call.1} parent=5 // pred_fallthru
        _
      %p155 = scmp.le.s32.totalorder 1, %s15
      %p156 = scmp.lt.s32.totalorder %s15, 3
      %p157 = pnand %p155, %p156
      %p158 = pneg %p157
      // Predicated region
      $region29: #{tpu_custom_call.1} parent=5 // pred_check
        _
      $region30: #{tpu_custom_call.1} parent=5 // pred_check_branch
        %160 = sbr.rel (%p157) target = $region32
      $region31: #{tpu_custom_call.1} parent=5 // pred_region
        %s161 = ssub.s32 %s15, 1
        %s162 = sand.u32 %s28, 1
        %s163 = scalar_lea.sflag [#allocation3], %s162
        %s164 = sand.u32 %s28, 1
        %s165 = smul.addr %s164, 16
        %s166 = scalar_lea.vmem [#allocation2], %s165
        // Predicated region
        $region33: #{tpu_custom_call.1} parent=31 // pred_check
          %p167 = pneg %p41
        $region34: #{tpu_custom_call.1} parent=31 // pred_check_branch
          %169 = sbr.rel (%p167) target = $region36
        $region35: #{tpu_custom_call.1} parent=31 // pred_region
          %170 = dma.done %s163, 256
        $region36: #{tpu_custom_call.1} parent=31 // pred_fallthru
          _
        %s171 = sand.u32 %s28, 1
        %s172 = scalar_lea.sflag [#allocation3], %s171
        %s173 = sand.u32 %s28, 1
        %s174 = smul.addr %s173, 16
        %s175 = scalar_lea.vmem [#allocation2], %s174
        %p176 = pneg %p41
        %p177 = pneg %p38
        %p178 = pneg %p62
        %p179 = pneg %p59
        %p180 = pneg %p83
        %p181 = pneg %p80
        %p182 = pneg %p109
        %p183 = pneg %p106
        %s184 = sand.u32 %s96, 1
        %s185 = scalar_lea.sflag [#allocation4], %s184
        %s186 = sand.u32 %s96, 1
        %s187 = smul.addr %s186, 16
        %s188 = scalar_lea.vmem [#allocation5], %s187
        %v189 = vld [vmem:[%s166] sm:$0xff]
        %v190 = vld [vmem:[%s166 + $0x8] sm:$0xff]
        %v191 = vmul.f32 %v189, %v189
        %v192 = vmul.f32 %v190, %v190
        %v193 = vadd.f32 %v191, %v192
        %v194 = vrot.slane %v193, 4
        %v195 = vadd.f32 %v193, %v194
        %v196 = vrot.slane %v195, 2
        %v197 = vadd.f32 %v195, %v196
        %v198 = vrot.slane %v197, 1
        %v199 = vadd.f32 %v197, %v198
        %200 = vrot.lane.b32.xlu0 %v199, 32
        %v201 = vpop.permute.xlu0 %200
        %v202 = vadd.f32 %v199, %v201
        %203 = vrot.lane.b32.xlu0 %v199, 64
        %v204 = vpop.permute.xlu0 %203
        %v205 = vadd.f32 %v202, %v204
        %206 = vrot.lane.b32.xlu0 %v199, 96
        %v207 = vpop.permute.xlu0 %206
        %v208 = vadd.f32 %v205, %v207
        %v209 = vrsqrt.pop %v208
        %v210 = vmul.f32 %v208, %v209
        %vm211 = vcmp.eq.f32.partialorder %v208, inf
        %v212 = vsel %vm211, %v208, %v210
        %vm213 = vcmp.eq.f32.partialorder %v208, 0.0
        %v214 = vand.u32 %v208, 2147483648
        %v215 = vsel %vm213, %v214, %v212
        %vm216 = vcmask 1040384
        %v217 = vsel %vm216, %v215, 0.0
        %218 = vadd.xlane.f32.xlu0 %v217
        %v219 = vpop.xlane.xlu0 %218
        %v220 = vrcp.pop 128.0
        %v221 = vmul.f32 %v219, %v220
        %v222 = vadd.f32 %v221, 1e-06
        %v223 = vrcp.pop %v222
        %v224 = vmul.f32 %v215, %v223
        %v225 = vld [vmem:[%s1] sm:$0x1]
        %v226 = vmul.f32 %v225, %v224
        %v227 = vadd.f32 %v226, 1.0
        %v229 = vlaneseq
        %v230 = vshrl.u32 %v229, 7
        %v231 = vsub.s32 0, %v230
        %v232 = vrot.slane %v227, %v231
        %v234 = vmul.f32 %v189, %v232
        %v235 = vmul.f32 %v190, %v232
        %v236 = vld [vmem:[%s2] sm:$0x1]
        %v238 = vlaneseq
        %v239 = vshrl.u32 %v238, 7
        %v240 = vsub.s32 0, %v239
        %v241 = vrot.slane %v236, %v240
        %v243 = vadd.f32 %v234, %v241
        %v244 = vadd.f32 %v235, %v241
        %245 = vst [vmem:[%s188] sm:$0xff] %v243
        %246 = vst [vmem:[%s188 + $0x8] sm:$0xff] %v244
        %s247 = sand.u32 %s96, 1
        %s248 = scalar_lea.sflag [#allocation4], %s247
        %s249 = sand.u32 %s96, 1
        %s250 = smul.addr %s249, 16
        %s251 = scalar_lea.vmem [#allocation5], %s250
        // Predicated region
        $region37: #{tpu_custom_call.1} parent=31 // pred_check
          %p252 = pneg %p106
        $region38: #{tpu_custom_call.1} parent=31 // pred_check_branch
          %254 = sbr.rel (%p252) target = $region40
        $region39: #{tpu_custom_call.1} parent=31 // pred_region
          %s256 = ssub.s32 256, 256
          %257 = vsyncadd %s248, %s256
          %s258 = smul.addr %s20, 2
          %s259 = smul.addr %s258, 128
          %s260 = scalar_lea.hbm %s3, %s259
          %s261 = sshll.u32 %s251, 4
          %s262 = int_to_ptr.vmem [resolvable:$true] %s261
          %267 = dma.vmem_to_hbm [thread:$0]  %s262, 256, %s260, %s248, 128, 128, 8
        $region40: #{tpu_custom_call.1} parent=31 // pred_fallthru
          _
      $region32: #{tpu_custom_call.1} parent=5 // pred_fallthru
        _
      %p268 = scmp.le.s32.totalorder 2, %s15
      // Predicated region
      $region41: #{tpu_custom_call.1} parent=5 // pred_check
        %p269 = pneg %p268
      $region42: #{tpu_custom_call.1} parent=5 // pred_check_branch
        %271 = sbr.rel (%p269) target = $region44
      $region43: #{tpu_custom_call.1} parent=5 // pred_region
        %s272 = ssub.s32 %s15, 2
        // Predicated region
        $region45: #{tpu_custom_call.1} parent=43 // pred_check
          %p273 = pneg %p112
        $region46: #{tpu_custom_call.1} parent=43 // pred_check_branch
          %275 = sbr.rel (%p273) target = $region48
        $region47: #{tpu_custom_call.1} parent=43 // pred_region
          %s276 = sand.u32 %s97, 1
          %s277 = scalar_lea.sflag [#allocation4], %s276
          %s278 = sand.u32 %s97, 1
          %s279 = smul.addr %s278, 16
          %s280 = scalar_lea.vmem [#allocation5], %s279
          %281 = dma.done %s277, 256
        $region48: #{tpu_custom_call.1} parent=43 // pred_fallthru
          _
      $region44: #{tpu_custom_call.1} parent=5 // pred_fallthru
        _
    $region6: #{tpu_custom_call.1} parent=1 // loop_footer
      %s19 = sadd.s32 1, %s15
    $region7: #{tpu_custom_call.1} parent=1 // loop_footer_branch
      %14 = sbr.rel target = $region3
    $region8: #{tpu_custom_call.1} parent=1 // loop_exit
      _
    %282 = vsyncpa [#allocation3], 1
    %s283 = scalar_lea.sflag [#allocation3], 1
    %284 = vsyncpa %s283, 1
    %285 = vsyncpa [#allocation4], 1
    %s286 = scalar_lea.sflag [#allocation4], 1
    %287 = vsyncpa %s286, 1

</llo_original>
